<compile_context>
chip_gen: v5e
topology: v5e:2x2
jax: 0.10.0
libtpu: 0.0.40
codegen_flags: <defaults>
</compile_context>

<pallas_src>
import functools

import jax
import jax.numpy as jnp
from jax.experimental import pallas as pl
from jax.experimental.pallas import tpu as pltpu


def _sepconv_kernel(x_ref, dw_ref, pw_ref, b_ref, o_ref, *, H, Wp, K):
    # x_ref : [NB, Cin, FP]   flat zero-padded input, FP = (H+2p)*Wp + 2p
    # dw_ref: [K*K, Cin, 1]   depthwise filters (per-tap, per-channel)
    # pw_ref: [Cout, Cin]     pointwise weights
    # b_ref : [Cout, 1]       fused bias (pw @ depthwise_bias + pointwise_bias)
    # o_ref : [NB, Cout, S]   S = H*Wp lane-dense output slab
    NB = x_ref.shape[0]
    Cout = o_ref.shape[1]
    S = H * Wp

    xf = x_ref[...].astype(jnp.float32)       # load once
    dw = dw_ref[...].astype(jnp.float32)      # load once (hoisted out of tap loop)

    # Depthwise conv: K*K statically shifted flat lane-slices, FMA on the VPU.
    acc = None
    for t in range(K * K):
        off = (t // K) * Wp + (t % K)         # static lane offset
        term = xf[:, :, off:off + S] * dw[t]  # [NB,Cin,S] * [Cin,1] broadcast
        acc = term if acc is None else acc + term

    # Pointwise 1x1 conv on the MXU, one small matmul per image.
    pw = pw_ref[...].astype(jnp.float32)
    # Hoisted bias broadcast (avoid per-iteration broadcast_in_dim).
    bias = jnp.broadcast_to(b_ref[...].astype(jnp.float32), (Cout, S))
    for n in range(NB):                       # NB is static & tiny -> unrolled
        y = jnp.dot(pw, acc[n], preferred_element_type=jnp.float32) + bias
        o_ref[n] = y.astype(o_ref.dtype)


def separable_conv(x_nchw, dw_w, dw_b, pw_w, pw_b, kernel_size, *, batch_block=None):
    """x_nchw: [N, Cin, H, W]; dw_w: [Cin, 1, K, K]; pw_w: [Cout, Cin, 1, 1]."""
    N, Cin, H, W = x_nchw.shape
    Cout = pw_w.shape[0]
    K = kernel_size
    # PyTorch padding=(K-1)//2 only preserves spatial dims for odd K.
    assert K % 2 == 1, "even kernel_size changes output dims; not supported here"
    p = (K - 1) // 2
    Hp, Wp = H + 2 * p, W + 2 * p
    S = H * Wp                     # flat output extent (includes 2p garbage cols/row)
    FP = Hp * Wp + 2 * p           # flat padded input extent (+2p tail for last tap)

    NB = N if batch_block is None else batch_block
    assert N % NB == 0

    # Flat zero-padded, spatial-major layout (no transposes needed for NCHW).
    xp = jnp.pad(x_nchw, ((0, 0), (0, 0), (p, p), (p, p)))
    xf = jnp.pad(xp.reshape(N, Cin, Hp * Wp), ((0, 0), (0, 0), (0, 2 * p)))
    # TODO(synk): at production H/W, move padding in-kernel and tile H into row
    # strips with a (K-1)-row halo (sized for v7x's 64 MiB VMEM, with
    # vmem_limit_bytes set) instead of one whole image per step.

    # Parameter re-layout (tiny, plain JAX glue).
    dw = jnp.transpose(dw_w[:, 0, :, :], (1, 2, 0)).reshape(K * K, Cin, 1)
    pw = pw_w[:, :, 0, 0]                                   # [Cout, Cin]
    fused_b = (pw @ dw_b + pw_b).reshape(Cout, 1)           # depthwise bias folded in

    kernel = functools.partial(_sepconv_kernel, H=H, Wp=Wp, K=K)
    out_flat = pl.pallas_call(
        kernel,
        out_shape=jax.ShapeDtypeStruct((N, Cout, S), x_nchw.dtype),
        grid_spec=pltpu.PrefetchScalarGridSpec(
            num_scalar_prefetch=0,
            grid=(N // NB,),
            in_specs=[
                pl.BlockSpec((NB, Cin, FP), lambda b: (b, 0, 0)),
                pl.BlockSpec((K * K, Cin, 1), lambda b: (0, 0, 0)),
                pl.BlockSpec((Cout, Cin), lambda b: (0, 0)),
                pl.BlockSpec((Cout, 1), lambda b: (0, 0)),
            ],
            out_specs=pl.BlockSpec((NB, Cout, S), lambda b: (b, 0, 0)),
        ),
        compiler_params=pltpu.CompilerParams(
            dimension_semantics=("parallel",)),
    )(xf, dw, pw, fused_b)

    # Drop the Wp-W garbage columns per row; stays NCHW (no transpose).
    return out_flat.reshape(N, Cout, H, Wp)[:, :, :, :W]


def _reference(x, dw_w, dw_b, pw_w, pw_b, K):
    """Pure-JAX reference matching nn.Conv2d semantics (NCHW)."""
    p = (K - 1) // 2
    cin = x.shape[1]
    out = jax.lax.conv_general_dilated(
        x, dw_w, window_strides=(1, 1), padding=[(p, p), (p, p)],
        dimension_numbers=("NCHW", "OIHW", "NCHW"),
        feature_group_count=cin)
    out = out + dw_b[None, :, None, None]
    out = jax.lax.conv_general_dilated(
        out, pw_w, window_strides=(1, 1), padding="VALID",
        dimension_numbers=("NCHW", "OIHW", "NCHW"))
    out = out + pw_b[None, :, None, None]
    return out


if __name__ == "__main__":
    # SeparableConv(in_planes=4, out_planes=8, kernel_size=3, bias=True)
    # applied to x of shape [2, 4, 16, 16] (NCHW).
    N, Cin, Cout, H, W, K = 2, 4, 8, 16, 16, 3

    key = jax.random.PRNGKey(0)
    kx, kdw, kdb, kpw, kpb = jax.random.split(key, 5)
    x = jax.random.normal(kx, (N, Cin, H, W), dtype=jnp.float32)
    dw_w = jax.random.normal(kdw, (Cin, 1, K, K), dtype=jnp.float32) * 0.1
    dw_b = jax.random.normal(kdb, (Cin,), dtype=jnp.float32) * 0.1
    pw_w = jax.random.normal(kpw, (Cout, Cin, 1, 1), dtype=jnp.float32) * 0.1
    pw_b = jax.random.normal(kpb, (Cout,), dtype=jnp.float32) * 0.1

    out = separable_conv(x, dw_w, dw_b, pw_w, pw_b, K)
    out = jax.block_until_ready(out)

    ref = _reference(x, dw_w, dw_b, pw_w, pw_b, K)
    assert out.shape == (N, Cout, H, W), out.shape
    assert jnp.allclose(out, ref, atol=1e-4, rtol=1e-4), "mismatch vs reference"

    print("KERNEL_OK")
</pallas_src>

<mosaic_0001>
module attributes {stable_mosaic.version = 11 : i64} {
  func.func @_sepconv_kernel(%arg0: i32, %arg1: memref<2x4x326xf32, #tpu.memory_space<vmem>>, %arg2: memref<9x4x1xf32, #tpu.memory_space<vmem>>, %arg3: memref<8x4xf32, #tpu.memory_space<vmem>>, %arg4: memref<8x1xf32, #tpu.memory_space<vmem>>, %arg5: memref<2x8x288xf32, #tpu.memory_space<vmem>>) attributes {dimension_semantics = [#tpu.dimension_semantics<parallel>], iteration_bounds = array<i64: 1>, scalar_prefetch = 0 : i64, scratch_operands = 0 : i64, tpu.core_type = #tpu.core_type<tc>, window_params = [{transform_indices = @transform_0, window_bounds = array<i64: 2, 4, 326>}, {pipeline_mode = #tpu.pipeline_mode<synchronous>, transform_indices = @transform_1, window_bounds = array<i64: 9, 4, 1>}, {pipeline_mode = #tpu.pipeline_mode<synchronous>, transform_indices = @transform_2, window_bounds = array<i64: 8, 4>}, {pipeline_mode = #tpu.pipeline_mode<synchronous>, transform_indices = @transform_3, window_bounds = array<i64: 8, 1>}, {transform_indices = @transform_4, window_bounds = array<i64: 2, 8, 288>}]} {
    %c0 = arith.constant 0 : index
    %c0_0 = arith.constant 0 : index
    %c0_1 = arith.constant 0 : index
    %0 = vector.load %arg1[%c0, %c0_0, %c0_1] : memref<2x4x326xf32, #tpu.memory_space<vmem>>, vector<2x4x326xf32>
    %c0_2 = arith.constant 0 : index
    %c0_3 = arith.constant 0 : index
    %c0_4 = arith.constant 0 : index
    %1 = vector.load %arg2[%c0_2, %c0_3, %c0_4] : memref<9x4x1xf32, #tpu.memory_space<vmem>>, vector<9x4x1xf32>
    %2 = vector.extract_strided_slice %0 {offsets = [0, 0, 0], sizes = [2, 4, 288], strides = [1, 1, 1]} : vector<2x4x326xf32> to vector<2x4x288xf32>
    %3 = vector.extract_strided_slice %1 {offsets = [0, 0, 0], sizes = [1, 4, 1], strides = [1, 1, 1]} : vector<9x4x1xf32> to vector<1x4x1xf32>
    %4 = vector.shape_cast %3 : vector<1x4x1xf32> to vector<4x1xf32>
    %5 = vector.shape_cast %4 : vector<4x1xf32> to vector<1x4x1xf32>
    %6 = vector.broadcast %5 : vector<1x4x1xf32> to vector<2x4x288xf32>
    %7 = arith.mulf %2, %6 : vector<2x4x288xf32>
    %8 = vector.extract_strided_slice %0 {offsets = [0, 0, 1], sizes = [2, 4, 288], strides = [1, 1, 1]} : vector<2x4x326xf32> to vector<2x4x288xf32>
    %9 = vector.extract_strided_slice %1 {offsets = [1, 0, 0], sizes = [1, 4, 1], strides = [1, 1, 1]} : vector<9x4x1xf32> to vector<1x4x1xf32>
    %10 = vector.shape_cast %9 : vector<1x4x1xf32> to vector<4x1xf32>
    %11 = vector.shape_cast %10 : vector<4x1xf32> to vector<1x4x1xf32>
    %12 = vector.broadcast %11 : vector<1x4x1xf32> to vector<2x4x288xf32>
    %13 = arith.mulf %8, %12 : vector<2x4x288xf32>
    %14 = arith.addf %7, %13 : vector<2x4x288xf32>
    %15 = vector.extract_strided_slice %0 {offsets = [0, 0, 2], sizes = [2, 4, 288], strides = [1, 1, 1]} : vector<2x4x326xf32> to vector<2x4x288xf32>
    %16 = vector.extract_strided_slice %1 {offsets = [2, 0, 0], sizes = [1, 4, 1], strides = [1, 1, 1]} : vector<9x4x1xf32> to vector<1x4x1xf32>
    %17 = vector.shape_cast %16 : vector<1x4x1xf32> to vector<4x1xf32>
    %18 = vector.shape_cast %17 : vector<4x1xf32> to vector<1x4x1xf32>
    %19 = vector.broadcast %18 : vector<1x4x1xf32> to vector<2x4x288xf32>
    %20 = arith.mulf %15, %19 : vector<2x4x288xf32>
    %21 = arith.addf %14, %20 : vector<2x4x288xf32>
    %22 = vector.extract_strided_slice %0 {offsets = [0, 0, 18], sizes = [2, 4, 288], strides = [1, 1, 1]} : vector<2x4x326xf32> to vector<2x4x288xf32>
    %23 = vector.extract_strided_slice %1 {offsets = [3, 0, 0], sizes = [1, 4, 1], strides = [1, 1, 1]} : vector<9x4x1xf32> to vector<1x4x1xf32>
    %24 = vector.shape_cast %23 : vector<1x4x1xf32> to vector<4x1xf32>
    %25 = vector.shape_cast %24 : vector<4x1xf32> to vector<1x4x1xf32>
    %26 = vector.broadcast %25 : vector<1x4x1xf32> to vector<2x4x288xf32>
    %27 = arith.mulf %22, %26 : vector<2x4x288xf32>
    %28 = arith.addf %21, %27 : vector<2x4x288xf32>
    %29 = vector.extract_strided_slice %0 {offsets = [0, 0, 19], sizes = [2, 4, 288], strides = [1, 1, 1]} : vector<2x4x326xf32> to vector<2x4x288xf32>
    %30 = vector.extract_strided_slice %1 {offsets = [4, 0, 0], sizes = [1, 4, 1], strides = [1, 1, 1]} : vector<9x4x1xf32> to vector<1x4x1xf32>
    %31 = vector.shape_cast %30 : vector<1x4x1xf32> to vector<4x1xf32>
    %32 = vector.shape_cast %31 : vector<4x1xf32> to vector<1x4x1xf32>
    %33 = vector.broadcast %32 : vector<1x4x1xf32> to vector<2x4x288xf32>
    %34 = arith.mulf %29, %33 : vector<2x4x288xf32>
    %35 = arith.addf %28, %34 : vector<2x4x288xf32>
    %36 = vector.extract_strided_slice %0 {offsets = [0, 0, 20], sizes = [2, 4, 288], strides = [1, 1, 1]} : vector<2x4x326xf32> to vector<2x4x288xf32>
    %37 = vector.extract_strided_slice %1 {offsets = [5, 0, 0], sizes = [1, 4, 1], strides = [1, 1, 1]} : vector<9x4x1xf32> to vector<1x4x1xf32>
    %38 = vector.shape_cast %37 : vector<1x4x1xf32> to vector<4x1xf32>
    %39 = vector.shape_cast %38 : vector<4x1xf32> to vector<1x4x1xf32>
    %40 = vector.broadcast %39 : vector<1x4x1xf32> to vector<2x4x288xf32>
    %41 = arith.mulf %36, %40 : vector<2x4x288xf32>
    %42 = arith.addf %35, %41 : vector<2x4x288xf32>
    %43 = vector.extract_strided_slice %0 {offsets = [0, 0, 36], sizes = [2, 4, 288], strides = [1, 1, 1]} : vector<2x4x326xf32> to vector<2x4x288xf32>
    %44 = vector.extract_strided_slice %1 {offsets = [6, 0, 0], sizes = [1, 4, 1], strides = [1, 1, 1]} : vector<9x4x1xf32> to vector<1x4x1xf32>
    %45 = vector.shape_cast %44 : vector<1x4x1xf32> to vector<4x1xf32>
    %46 = vector.shape_cast %45 : vector<4x1xf32> to vector<1x4x1xf32>
    %47 = vector.broadcast %46 : vector<1x4x1xf32> to vector<2x4x288xf32>
    %48 = arith.mulf %43, %47 : vector<2x4x288xf32>
    %49 = arith.addf %42, %48 : vector<2x4x288xf32>
    %50 = vector.extract_strided_slice %0 {offsets = [0, 0, 37], sizes = [2, 4, 288], strides = [1, 1, 1]} : vector<2x4x326xf32> to vector<2x4x288xf32>
    %51 = vector.extract_strided_slice %1 {offsets = [7, 0, 0], sizes = [1, 4, 1], strides = [1, 1, 1]} : vector<9x4x1xf32> to vector<1x4x1xf32>
    %52 = vector.shape_cast %51 : vector<1x4x1xf32> to vector<4x1xf32>
    %53 = vector.shape_cast %52 : vector<4x1xf32> to vector<1x4x1xf32>
    %54 = vector.broadcast %53 : vector<1x4x1xf32> to vector<2x4x288xf32>
    %55 = arith.mulf %50, %54 : vector<2x4x288xf32>
    %56 = arith.addf %49, %55 : vector<2x4x288xf32>
    %57 = vector.extract_strided_slice %0 {offsets = [0, 0, 38], sizes = [2, 4, 288], strides = [1, 1, 1]} : vector<2x4x326xf32> to vector<2x4x288xf32>
    %58 = vector.extract_strided_slice %1 {offsets = [8, 0, 0], sizes = [1, 4, 1], strides = [1, 1, 1]} : vector<9x4x1xf32> to vector<1x4x1xf32>
    %59 = vector.shape_cast %58 : vector<1x4x1xf32> to vector<4x1xf32>
    %60 = vector.shape_cast %59 : vector<4x1xf32> to vector<1x4x1xf32>
    %61 = vector.broadcast %60 : vector<1x4x1xf32> to vector<2x4x288xf32>
    %62 = arith.mulf %57, %61 : vector<2x4x288xf32>
    %63 = arith.addf %56, %62 : vector<2x4x288xf32>
    %c0_5 = arith.constant 0 : index
    %c0_6 = arith.constant 0 : index
    %64 = vector.load %arg3[%c0_5, %c0_6] : memref<8x4xf32, #tpu.memory_space<vmem>>, vector<8x4xf32>
    %c0_7 = arith.constant 0 : index
    %c0_8 = arith.constant 0 : index
    %65 = vector.load %arg4[%c0_7, %c0_8] : memref<8x1xf32, #tpu.memory_space<vmem>>, vector<8x1xf32>
    %66 = vector.shape_cast %65 : vector<8x1xf32> to vector<8x1xf32>
    %67 = vector.broadcast %66 : vector<8x1xf32> to vector<8x288xf32>
    %68 = vector.extract_strided_slice %63 {offsets = [0, 0, 0], sizes = [1, 4, 288], strides = [1, 1, 1]} : vector<2x4x288xf32> to vector<1x4x288xf32>
    %69 = vector.shape_cast %68 : vector<1x4x288xf32> to vector<4x288xf32>
    %cst = arith.constant dense<0.000000e+00> : vector<8x288xf32>
    %70 = tpu.matmul %64, %69, %cst {dimension_numbers = #tpu.dot_dimension_numbers<[1], [0], [0], [1], [0, 0, 1, 1], [], []>} : vector<8x4xf32>, vector<4x288xf32>, vector<8x288xf32> -> vector<8x288xf32>
    %71 = arith.addf %70, %67 : vector<8x288xf32>
    %c0_9 = arith.constant 0 : index
    %c0_10 = arith.constant 0 : index
    %c0_11 = arith.constant 0 : index
    %72 = vector.load %arg5[%c0_9, %c0_10, %c0_11] : memref<2x8x288xf32, #tpu.memory_space<vmem>>, vector<1x8x288xf32>
    %73 = vector.shape_cast %72 : vector<1x8x288xf32> to vector<8x288xf32>
    %74 = vector.shape_cast %71 : vector<8x288xf32> to vector<1x8x288xf32>
    tpu.vector_store %arg5[%c0_9, %c0_10, %c0_11], %74 {strides = array<i32>} : memref<2x8x288xf32, #tpu.memory_space<vmem>>, vector<1x8x288xf32>,
    %75 = vector.extract_strided_slice %63 {offsets = [1, 0, 0], sizes = [1, 4, 288], strides = [1, 1, 1]} : vector<2x4x288xf32> to vector<1x4x288xf32>
    %76 = vector.shape_cast %75 : vector<1x4x288xf32> to vector<4x288xf32>
    %cst_12 = arith.constant dense<0.000000e+00> : vector<8x288xf32>
    %77 = tpu.matmul %64, %76, %cst_12 {dimension_numbers = #tpu.dot_dimension_numbers<[1], [0], [0], [1], [0, 0, 1, 1], [], []>} : vector<8x4xf32>, vector<4x288xf32>, vector<8x288xf32> -> vector<8x288xf32>
    %78 = arith.addf %77, %67 : vector<8x288xf32>
    %c1 = arith.constant 1 : index
    %c0_13 = arith.constant 0 : index
    %c0_14 = arith.constant 0 : index
    %79 = vector.load %arg5[%c1, %c0_13, %c0_14] : memref<2x8x288xf32, #tpu.memory_space<vmem>>, vector<1x8x288xf32>
    %80 = vector.shape_cast %79 : vector<1x8x288xf32> to vector<8x288xf32>
    %81 = vector.shape_cast %78 : vector<8x288xf32> to vector<1x8x288xf32>
    tpu.vector_store %arg5[%c1, %c0_13, %c0_14], %81 {strides = array<i32>} : memref<2x8x288xf32, #tpu.memory_space<vmem>>, vector<1x8x288xf32>,
    return
  }
  func.func @transform_0(%arg0: i32) -> (i32, i32, i32) {
    %c0_i32 = arith.constant 0 : i32
    %c0_i32_0 = arith.constant 0 : i32
    %c0_i32_1 = arith.constant 0 : i32
    return %arg0, %c0_i32, %c0_i32_0 : i32, i32, i32
  }
  func.func @transform_1(%arg0: i32) -> (i32, i32, i32) {
    %c0_i32 = arith.constant 0 : i32
    %c0_i32_0 = arith.constant 0 : i32
    %c0_i32_1 = arith.constant 0 : i32
    %c0_i32_2 = arith.constant 0 : i32
    return %c0_i32, %c0_i32_0, %c0_i32_1 : i32, i32, i32
  }
  func.func @transform_2(%arg0: i32) -> (i32, i32) {
    %c0_i32 = arith.constant 0 : i32
    %c0_i32_0 = arith.constant 0 : i32
    %c0_i32_1 = arith.constant 0 : i32
    return %c0_i32, %c0_i32_0 : i32, i32
  }
  func.func @transform_3(%arg0: i32) -> (i32, i32) {
    %c0_i32 = arith.constant 0 : i32
    %c0_i32_0 = arith.constant 0 : i32
    %c0_i32_1 = arith.constant 0 : i32
    return %c0_i32, %c0_i32_0 : i32, i32
  }
  func.func @transform_4(%arg0: i32) -> (i32, i32, i32) {
    %c0_i32 = arith.constant 0 : i32
    %c0_i32_0 = arith.constant 0 : i32
    %c0_i32_1 = arith.constant 0 : i32
    return %arg0, %c0_i32, %c0_i32_0 : i32, i32, i32
  }
}

</mosaic_0001>

<llo_original>
// kernel: tpu_custom_call.1
$region0: #{tpu_custom_call.1}
  #allocation0 [shape = 'u32[]', space=smem, size = 0x4, offset = 0x4, fixed_abs, tag = 'smem constant byte address 0x4 - core index']
  #allocation1 [shape = 'u32[72,128]{1,0:T(1,128)}', space=vmem, size = 0x9000, scoped, tag = 'internal scratch']
  %s0 = inlined_call_operand.vmem [shape: f32[2,4,326], index: 0, kind: input, shape index: {}]
  %s1 = inlined_call_operand.vmem [shape: f32[9,4,1], index: 1, kind: input, shape index: {}]
  %s2 = inlined_call_operand.vmem [shape: f32[8,4], index: 2, kind: input, shape index: {}]
  %s3 = inlined_call_operand.vmem [shape: f32[8,1], index: 3, kind: input, shape index: {}]
  %s4 = inlined_call_operand.hbm [shape: f32[2,8,288], index: 4, kind: output, shape index: {}]
  %s5 = sld [smem:[#allocation0]]
  $region26: #{tpu_custom_call.1} parent=0
    _
  %s7 = ssub.s32 1, %s5
  %s8 = scalar_select 0, %s7, %s5
  $region1: #{tpu_custom_call.1} parent=0
    #allocation2 [shape = 'u8[24576]{0}', space=vmem, size = 0x6000, scoped, tag = 'output window, operand 0, single buffered']
    #allocation3 [shape = 's32[1]{0}', space=sflag, size = 0x4, scoped, tag = 'scoped memory for tpu_custom_call.1']
    %9 = vsyncpa [#allocation3], 0
    // Predicated region
    $region2: #{tpu_custom_call.1} parent=1 // pred_check
      _
    $region3: #{tpu_custom_call.1} parent=1 // pred_check_branch
      %11 = sbr.rel (0) target = $region5
    $region4: #{tpu_custom_call.1} parent=1 // pred_region
      _
    $region5: #{tpu_custom_call.1} parent=1 // pred_fallthru
      _
    // Predicated region
    $region6: #{tpu_custom_call.1} parent=1 // pred_check
      _
    $region7: #{tpu_custom_call.1} parent=1 // pred_check_branch
      %13 = sbr.rel (0) target = $region9
    $region8: #{tpu_custom_call.1} parent=1 // pred_region
      _
    $region9: #{tpu_custom_call.1} parent=1 // pred_fallthru
      _
    // Predicated region
    $region10: #{tpu_custom_call.1} parent=1 // pred_check
      _
    $region11: #{tpu_custom_call.1} parent=1 // pred_check_branch
      %15 = sbr.rel (0) target = $region13
    $region12: #{tpu_custom_call.1} parent=1 // pred_region
      _
    $region13: #{tpu_custom_call.1} parent=1 // pred_fallthru
      _
    // Predicated region
    $region14: #{tpu_custom_call.1} parent=1 // pred_check
      _
    $region15: #{tpu_custom_call.1} parent=1 // pred_check_branch
      %17 = sbr.rel (0) target = $region17
    $region16: #{tpu_custom_call.1} parent=1 // pred_region
      _
    $region17: #{tpu_custom_call.1} parent=1 // pred_fallthru
      _
    %v18 = vld [vmem:[%s0] sm:$0xff]
    %v19 = vld [vmem:[%s0 + $0x8] sm:$0xf]
    %v20 = vld [vmem:[%s0 + $0xc] sm:$0xff]
    %v21 = vld [vmem:[%s0 + $0x14] sm:$0xf]
    %v22 = vld [vmem:[%s1] sm:$0xf]
    %v23 = vld [vmem:[%s1 + $0x4] sm:$0xf]
    %v24 = vld [vmem:[%s1 + $0x8] sm:$0xf]
    %v25 = vld [vmem:[%s1 + $0xc] sm:$0xf]
    %v26 = vld [vmem:[%s1 + $0x10] sm:$0xf]
    %v27 = vld [vmem:[%s1 + $0x14] sm:$0xf]
    %v28 = vld [vmem:[%s1 + $0x18] sm:$0xf]
    %v29 = vld [vmem:[%s1 + $0x1c] sm:$0xf]
    %v30 = vld [vmem:[%s1 + $0x20] sm:$0xf]
    %32 = vset.pattern.permute.xlu0 0
    %33 = vperm.xlu0 %32, %v22
    %v34 = vpop.permute.xlu0 %33
    %v36 = vunpack.c.l.s4 839922192
    %v37 = vunpack.c.0.s8 %v36
    %v38 = vperm.slane %v34, %v37
    %v40 = vmul.f32 %v18, %v38
    %v41 = vmul.f32 %v19, %v38
    %v42 = vmul.f32 %v20, %v38
    %v43 = vmul.f32 %v21, %v38
    %45 = vset.pattern.permute.xlu0 0
    %46 = vperm.xlu0 %45, %v23
    %v47 = vpop.permute.xlu0 %46
    %v49 = vunpack.c.l.s4 839922192
    %v50 = vunpack.c.0.s8 %v49
    %v51 = vperm.slane %v47, %v50
    %v53 = vmul.f32 %v18, %v51
    %v54 = vmul.f32 %v19, %v51
    %v55 = vmul.f32 %v20, %v51
    %v56 = vmul.f32 %v21, %v51
    %61 = vrot.lane.b32.xlu0 %v53, 127
    %v62 = vpop.permute.xlu0 %61
    %63 = vrot.lane.b32.xlu0 %v54, 127
    %v64 = vpop.permute.xlu0 %63
    %65 = vrot.lane.b32.xlu0 %v55, 127
    %v66 = vpop.permute.xlu0 %65
    %67 = vrot.lane.b32.xlu0 %v56, 127
    %v68 = vpop.permute.xlu0 %67
    %v69 = vrot.slane %v62, 4
    %v70 = vrot.slane %v64, 4
    %v71 = vrot.slane %v66, 4
    %v72 = vrot.slane %v68, 4
    %vm73 = vcmask 1043456
    %v74 = vsel %vm73, %v69, %v70
    %vm75 = vcmask 1039360
    %v76 = vsel %vm75, %v62, %v74
    %v77 = vsel %vm73, %v71, %v72
    %v78 = vsel %vm75, %v66, %v77
    %v83 = vadd.f32 %v40, %v76
    %v84 = vadd.f32 %v41, %v64
    %v85 = vadd.f32 %v42, %v78
    %v86 = vadd.f32 %v43, %v68
    %88 = vset.pattern.permute.xlu0 0
    %89 = vperm.xlu0 %88, %v24
    %v90 = vpop.permute.xlu0 %89
    %v92 = vunpack.c.l.s4 839922192
    %v93 = vunpack.c.0.s8 %v92
    %v94 = vperm.slane %v90, %v93
    %v96 = vmul.f32 %v18, %v94
    %v97 = vmul.f32 %v19, %v94
    %v98 = vmul.f32 %v20, %v94
    %v99 = vmul.f32 %v21, %v94
    %104 = vrot.lane.b32.xlu0 %v96, 126
    %v105 = vpop.permute.xlu0 %104
    %106 = vrot.lane.b32.xlu0 %v97, 126
    %v107 = vpop.permute.xlu0 %106
    %108 = vrot.lane.b32.xlu0 %v98, 126
    %v109 = vpop.permute.xlu0 %108
    %110 = vrot.lane.b32.xlu0 %v99, 126
    %v111 = vpop.permute.xlu0 %110
    %v112 = vrot.slane %v105, 4
    %v113 = vrot.slane %v107, 4
    %v114 = vrot.slane %v109, 4
    %v115 = vrot.slane %v111, 4
    %v116 = vsel %vm73, %v112, %v113
    %vm117 = vcmask 1031168
    %v118 = vsel %vm117, %v105, %v116
    %v119 = vsel %vm73, %v114, %v115
    %v120 = vsel %vm117, %v109, %v119
    %v125 = vadd.f32 %v83, %v118
    %v126 = vadd.f32 %v84, %v107
    %v127 = vadd.f32 %v85, %v120
    %v128 = vadd.f32 %v86, %v111
    %130 = vset.pattern.permute.xlu0 0
    %131 = vperm.xlu0 %130, %v25
    %v132 = vpop.permute.xlu0 %131
    %v134 = vunpack.c.l.s4 839922192
    %v135 = vunpack.c.0.s8 %v134
    %v136 = vperm.slane %v132, %v135
    %v138 = vmul.f32 %v18, %v136
    %v139 = vmul.f32 %v19, %v136
    %v140 = vmul.f32 %v20, %v136
    %v141 = vmul.f32 %v21, %v136
    %146 = vrot.lane.b32.xlu0 %v138, 110
    %v147 = vpop.permute.xlu0 %146
    %148 = vrot.lane.b32.xlu0 %v139, 110
    %v149 = vpop.permute.xlu0 %148
    %150 = vrot.lane.b32.xlu0 %v140, 110
    %v151 = vpop.permute.xlu0 %150
    %152 = vrot.lane.b32.xlu0 %v141, 110
    %v153 = vpop.permute.xlu0 %152
    %v154 = vrot.slane %v147, 4
    %v155 = vrot.slane %v149, 4
    %v156 = vrot.slane %v151, 4
    %v157 = vrot.slane %v153, 4
    %v158 = vsel %vm73, %v154, %v155
    %vm159 = vcmask 900096
    %v160 = vsel %vm159, %v147, %v158
    %v161 = vsel %vm73, %v156, %v157
    %v162 = vsel %vm159, %v151, %v161
    %v167 = vadd.f32 %v125, %v160
    %v168 = vadd.f32 %v126, %v149
    %v169 = vadd.f32 %v127, %v162
    %v170 = vadd.f32 %v128, %v153
    %172 = vset.pattern.permute.xlu0 0
    %173 = vperm.xlu0 %172, %v26
    %v174 = vpop.permute.xlu0 %173
    %v176 = vunpack.c.l.s4 839922192
    %v177 = vunpack.c.0.s8 %v176
    %v178 = vperm.slane %v174, %v177
    %v180 = vmul.f32 %v18, %v178
    %v181 = vmul.f32 %v19, %v178
    %v182 = vmul.f32 %v20, %v178
    %v183 = vmul.f32 %v21, %v178
    %188 = vrot.lane.b32.xlu0 %v180, 109
    %v189 = vpop.permute.xlu0 %188
    %190 = vrot.lane.b32.xlu0 %v181, 109
    %v191 = vpop.permute.xlu0 %190
    %192 = vrot.lane.b32.xlu0 %v182, 109
    %v193 = vpop.permute.xlu0 %192
    %194 = vrot.lane.b32.xlu0 %v183, 109
    %v195 = vpop.permute.xlu0 %194
    %v196 = vrot.slane %v189, 4
    %v197 = vrot.slane %v191, 4
    %v198 = vrot.slane %v193, 4
    %v199 = vrot.slane %v195, 4
    %v200 = vsel %vm73, %v196, %v197
    %vm201 = vcmask 891904
    %v202 = vsel %vm201, %v189, %v200
    %v203 = vsel %vm73, %v198, %v199
    %v204 = vsel %vm201, %v193, %v203
    %v209 = vadd.f32 %v167, %v202
    %v210 = vadd.f32 %v168, %v191
    %v211 = vadd.f32 %v169, %v204
    %v212 = vadd.f32 %v170, %v195
    %214 = vset.pattern.permute.xlu0 0
    %215 = vperm.xlu0 %214, %v27
    %v216 = vpop.permute.xlu0 %215
    %v218 = vunpack.c.l.s4 839922192
    %v219 = vunpack.c.0.s8 %v218
    %v220 = vperm.slane %v216, %v219
    %v222 = vmul.f32 %v18, %v220
    %v223 = vmul.f32 %v19, %v220
    %v224 = vmul.f32 %v20, %v220
    %v225 = vmul.f32 %v21, %v220
    %230 = vrot.lane.b32.xlu0 %v222, 108
    %v231 = vpop.permute.xlu0 %230
    %232 = vrot.lane.b32.xlu0 %v223, 108
    %v233 = vpop.permute.xlu0 %232
    %234 = vrot.lane.b32.xlu0 %v224, 108
    %v235 = vpop.permute.xlu0 %234
    %236 = vrot.lane.b32.xlu0 %v225, 108
    %v237 = vpop.permute.xlu0 %236
    %v238 = vrot.slane %v231, 4
    %v239 = vrot.slane %v233, 4
    %v240 = vrot.slane %v235, 4
    %v241 = vrot.slane %v237, 4
    %v242 = vsel %vm73, %v238, %v239
    %vm243 = vcmask 883712
    %v244 = vsel %vm243, %v231, %v242
    %v245 = vsel %vm73, %v240, %v241
    %v246 = vsel %vm243, %v235, %v245
    %v251 = vadd.f32 %v209, %v244
    %v252 = vadd.f32 %v210, %v233
    %v253 = vadd.f32 %v211, %v246
    %v254 = vadd.f32 %v212, %v237
    %256 = vset.pattern.permute.xlu0 0
    %257 = vperm.xlu0 %256, %v28
    %v258 = vpop.permute.xlu0 %257
    %v260 = vunpack.c.l.s4 839922192
    %v261 = vunpack.c.0.s8 %v260
    %v262 = vperm.slane %v258, %v261
    %v264 = vmul.f32 %v18, %v262
    %v265 = vmul.f32 %v19, %v262
    %v266 = vmul.f32 %v20, %v262
    %v267 = vmul.f32 %v21, %v262
    %272 = vrot.lane.b32.xlu0 %v264, 92
    %v273 = vpop.permute.xlu0 %272
    %274 = vrot.lane.b32.xlu0 %v265, 92
    %v275 = vpop.permute.xlu0 %274
    %276 = vrot.lane.b32.xlu0 %v266, 92
    %v277 = vpop.permute.xlu0 %276
    %278 = vrot.lane.b32.xlu0 %v267, 92
    %v279 = vpop.permute.xlu0 %278
    %v280 = vrot.slane %v273, 4
    %v281 = vrot.slane %v275, 4
    %v282 = vrot.slane %v277, 4
    %v283 = vrot.slane %v279, 4
    %v284 = vsel %vm73, %v280, %v281
    %vm285 = vcmask 752640
    %v286 = vsel %vm285, %v273, %v284
    %v287 = vsel %vm73, %v282, %v283
    %v288 = vsel %vm285, %v277, %v287
    %v293 = vadd.f32 %v251, %v286
    %v294 = vadd.f32 %v252, %v275
    %v295 = vadd.f32 %v253, %v288
    %v296 = vadd.f32 %v254, %v279
    %298 = vset.pattern.permute.xlu0 0
    %299 = vperm.xlu0 %298, %v29
    %v300 = vpop.permute.xlu0 %299
    %v302 = vunpack.c.l.s4 839922192
    %v303 = vunpack.c.0.s8 %v302
    %v304 = vperm.slane %v300, %v303
    %v306 = vmul.f32 %v18, %v304
    %v307 = vmul.f32 %v19, %v304
    %v308 = vmul.f32 %v20, %v304
    %v309 = vmul.f32 %v21, %v304
    %314 = vrot.lane.b32.xlu0 %v306, 91
    %v315 = vpop.permute.xlu0 %314
    %316 = vrot.lane.b32.xlu0 %v307, 91
    %v317 = vpop.permute.xlu0 %316
    %318 = vrot.lane.b32.xlu0 %v308, 91
    %v319 = vpop.permute.xlu0 %318
    %320 = vrot.lane.b32.xlu0 %v309, 91
    %v321 = vpop.permute.xlu0 %320
    %v322 = vrot.slane %v315, 4
    %v323 = vrot.slane %v317, 4
    %v324 = vrot.slane %v319, 4
    %v325 = vrot.slane %v321, 4
    %v326 = vsel %vm73, %v322, %v323
    %vm327 = vcmask 744448
    %v328 = vsel %vm327, %v315, %v326
    %v329 = vsel %vm73, %v324, %v325
    %v330 = vsel %vm327, %v319, %v329
    %v335 = vadd.f32 %v293, %v328
    %v336 = vadd.f32 %v294, %v317
    %v337 = vadd.f32 %v295, %v330
    %v338 = vadd.f32 %v296, %v321
    %340 = vset.pattern.permute.xlu0 0
    %341 = vperm.xlu0 %340, %v30
    %v342 = vpop.permute.xlu0 %341
    %v344 = vunpack.c.l.s4 839922192
    %v345 = vunpack.c.0.s8 %v344
    %v346 = vperm.slane %v342, %v345
    %v348 = vmul.f32 %v18, %v346
    %v349 = vmul.f32 %v19, %v346
    %v350 = vmul.f32 %v20, %v346
    %v351 = vmul.f32 %v21, %v346
    %356 = vrot.lane.b32.xlu0 %v348, 90
    %v357 = vpop.permute.xlu0 %356
    %358 = vrot.lane.b32.xlu0 %v349, 90
    %v359 = vpop.permute.xlu0 %358
    %360 = vrot.lane.b32.xlu0 %v350, 90
    %v361 = vpop.permute.xlu0 %360
    %362 = vrot.lane.b32.xlu0 %v351, 90
    %v363 = vpop.permute.xlu0 %362
    %v364 = vrot.slane %v357, 4
    %v365 = vrot.slane %v359, 4
    %v366 = vrot.slane %v361, 4
    %v367 = vrot.slane %v363, 4
    %v368 = vsel %vm73, %v364, %v365
    %vm369 = vcmask 736256
    %v370 = vsel %vm369, %v357, %v368
    %v371 = vsel %vm73, %v366, %v367
    %v372 = vsel %vm369, %v361, %v371
    %v377 = vadd.f32 %v335, %v370
    %v378 = vadd.f32 %v336, %v359
    %v379 = vadd.f32 %v337, %v372
    %v380 = vadd.f32 %v338, %v363
    %v381 = vld [vmem:[%s2] sm:$0xff]
    %v382 = vld [vmem:[%s3] sm:$0xff]
    %384 = vset.pattern.permute.xlu0 0
    %385 = vperm.xlu0 %384, %v382
    %v386 = vpop.permute.xlu0 %385
    %390 = vst [vmem:[#allocation1] ss:$2 sm:$0xff] %v377
    %s391 = scalar_lea.vmem [#allocation1], 16
    %392 = vst [vmem:[%s391] ss:$2 sm:$0xff] %v378
    %v393 = vld.sshfl [vmem:[#allocation1] sm:$0xff pattern:$0x75316420]
    %v394 = vld.sshfl [vmem:[#allocation1 + $0x8] sm:$0xff pattern:$0x75316420]
    %v395 = vld.sshfl [vmem:[#allocation1 + $0x10] sm:$0xff pattern:$0x75316420]
    %vm396 = vcmask 31744
    %v398 = vsel %vm396, %v381, 0
    %v400 = vsel %vm73, %v393, 0
    %v402 = vsel %vm73, %v394, 0
    %v404 = vsel %vm73, %v395, 0
    %406 = vmatpush.msra.mxu0 0.0
    %407 = vmatpush.msra.mxu0 0.0
    %408 = vmatpush.msra.mxu0 0.0
    %409 = vmatpush.msra.mxu0 0.0
    %410 = vmatpush.msra.mxu0 0.0
    %411 = vmatpush.msra.mxu0 0.0
    %412 = vmatpush.msra.mxu0 0.0
    %413 = vmatpush.msra.mxu0 0.0
    %414 = vmatpush.msra.mxu0 0.0
    %415 = vmatpush.msra.mxu0 0.0
    %416 = vmatpush.msra.mxu0 0.0
    %417 = vmatpush.msra.mxu0 0.0
    %418 = vmatpush.msra.mxu0 0.0
    %419 = vmatpush.msra.mxu0 0.0
    %420 = vmatpush.msra.mxu0 0.0
    %421 = vmatpush.msra.mxu0 %v400
    %422 = vmatmul.f32.gmra.mxu0 %v398
    %v423 = vpop.f32.mrf.mxu0
    %v424 = vadd.f32 %v386, %v423
    %425 = vdwg.mxu0
    %426 = vmatpush.msra.mxu0 0.0
    %427 = vmatpush.msra.mxu0 0.0
    %428 = vmatpush.msra.mxu0 0.0
    %429 = vmatpush.msra.mxu0 0.0
    %430 = vmatpush.msra.mxu0 0.0
    %431 = vmatpush.msra.mxu0 0.0
    %432 = vmatpush.msra.mxu0 0.0
    %433 = vmatpush.msra.mxu0 0.0
    %434 = vmatpush.msra.mxu0 0.0
    %435 = vmatpush.msra.mxu0 0.0
    %436 = vmatpush.msra.mxu0 0.0
    %437 = vmatpush.msra.mxu0 0.0
    %438 = vmatpush.msra.mxu0 0.0
    %439 = vmatpush.msra.mxu0 0.0
    %440 = vmatpush.msra.mxu0 0.0
    %441 = vmatpush.msra.mxu0 %v402
    %442 = vmatmul.f32.gmra.mxu0 %v398
    %v443 = vpop.f32.mrf.mxu0
    %v444 = vadd.f32 %v386, %v443
    %445 = vdwg.mxu0
    %446 = vmatpush.msra.mxu0 0.0
    %447 = vmatpush.msra.mxu0 0.0
    %448 = vmatpush.msra.mxu0 0.0
    %449 = vmatpush.msra.mxu0 0.0
    %450 = vmatpush.msra.mxu0 0.0
    %451 = vmatpush.msra.mxu0 0.0
    %452 = vmatpush.msra.mxu0 0.0
    %453 = vmatpush.msra.mxu0 0.0
    %454 = vmatpush.msra.mxu0 0.0
    %455 = vmatpush.msra.mxu0 0.0
    %456 = vmatpush.msra.mxu0 0.0
    %457 = vmatpush.msra.mxu0 0.0
    %458 = vmatpush.msra.mxu0 0.0
    %459 = vmatpush.msra.mxu0 0.0
    %460 = vmatpush.msra.mxu0 0.0
    %461 = vmatpush.msra.mxu0 %v404
    %462 = vmatmul.f32.gmra.mxu0 %v398
    %v463 = vpop.f32.mrf.mxu0
    %v464 = vadd.f32 %v386, %v463
    %465 = vdwg.mxu0
    %466 = vst [vmem:[#allocation2] sm:$0xff] %v424
    %467 = vst [vmem:[#allocation2 + $0x8] sm:$0xff] %v444
    %vm468 = vcmask 261120
    %469 = vst.msk [vmem:[#allocation2 + $0x10] sm:$0xff] %vm468, %v464
    %472 = vst [vmem:[#allocation1] ss:$2 sm:$0xff] %v379
    %s473 = scalar_lea.vmem [#allocation1], 16
    %474 = vst [vmem:[%s473] ss:$2 sm:$0xff] %v380
    %v475 = vld.sshfl [vmem:[#allocation1] sm:$0xff pattern:$0x75316420]
    %v476 = vld.sshfl [vmem:[#allocation1 + $0x8] sm:$0xff pattern:$0x75316420]
    %v477 = vld.sshfl [vmem:[#allocation1 + $0x10] sm:$0xff pattern:$0x75316420]
    %v478 = vsel %vm73, %v475, 0
    %v480 = vsel %vm73, %v476, 0
    %v482 = vsel %vm73, %v477, 0
    %484 = vmatpush.msra.mxu0 0.0
    %485 = vmatpush.msra.mxu0 0.0
    %486 = vmatpush.msra.mxu0 0.0
    %487 = vmatpush.msra.mxu0 0.0
    %488 = vmatpush.msra.mxu0 0.0
    %489 = vmatpush.msra.mxu0 0.0
    %490 = vmatpush.msra.mxu0 0.0
    %491 = vmatpush.msra.mxu0 0.0
    %492 = vmatpush.msra.mxu0 0.0
    %493 = vmatpush.msra.mxu0 0.0
    %494 = vmatpush.msra.mxu0 0.0
    %495 = vmatpush.msra.mxu0 0.0
    %496 = vmatpush.msra.mxu0 0.0
    %497 = vmatpush.msra.mxu0 0.0
    %498 = vmatpush.msra.mxu0 0.0
    %499 = vmatpush.msra.mxu0 %v478
    %500 = vmatmul.f32.gmra.mxu0 %v398
    %v501 = vpop.f32.mrf.mxu0
    %v502 = vadd.f32 %v386, %v501
    %503 = vdwg.mxu0
    %504 = vmatpush.msra.mxu0 0.0
    %505 = vmatpush.msra.mxu0 0.0
    %506 = vmatpush.msra.mxu0 0.0
    %507 = vmatpush.msra.mxu0 0.0
    %508 = vmatpush.msra.mxu0 0.0
    %509 = vmatpush.msra.mxu0 0.0
    %510 = vmatpush.msra.mxu0 0.0
    %511 = vmatpush.msra.mxu0 0.0
    %512 = vmatpush.msra.mxu0 0.0
    %513 = vmatpush.msra.mxu0 0.0
    %514 = vmatpush.msra.mxu0 0.0
    %515 = vmatpush.msra.mxu0 0.0
    %516 = vmatpush.msra.mxu0 0.0
    %517 = vmatpush.msra.mxu0 0.0
    %518 = vmatpush.msra.mxu0 0.0
    %519 = vmatpush.msra.mxu0 %v480
    %520 = vmatmul.f32.gmra.mxu0 %v398
    %v521 = vpop.f32.mrf.mxu0
    %v522 = vadd.f32 %v386, %v521
    %523 = vdwg.mxu0
    %524 = vmatpush.msra.mxu0 0.0
    %525 = vmatpush.msra.mxu0 0.0
    %526 = vmatpush.msra.mxu0 0.0
    %527 = vmatpush.msra.mxu0 0.0
    %528 = vmatpush.msra.mxu0 0.0
    %529 = vmatpush.msra.mxu0 0.0
    %530 = vmatpush.msra.mxu0 0.0
    %531 = vmatpush.msra.mxu0 0.0
    %532 = vmatpush.msra.mxu0 0.0
    %533 = vmatpush.msra.mxu0 0.0
    %534 = vmatpush.msra.mxu0 0.0
    %535 = vmatpush.msra.mxu0 0.0
    %536 = vmatpush.msra.mxu0 0.0
    %537 = vmatpush.msra.mxu0 0.0
    %538 = vmatpush.msra.mxu0 0.0
    %539 = vmatpush.msra.mxu0 %v482
    %540 = vmatmul.f32.gmra.mxu0 %v398
    %v541 = vpop.f32.mrf.mxu0
    %v542 = vadd.f32 %v386, %v541
    %543 = vdwg.mxu0
    %s544 = scalar_lea.vmem [#allocation2], 24
    %545 = vst [vmem:[%s544] sm:$0xff] %v502
    %546 = vst [vmem:[%s544 + $0x8] sm:$0xff] %v522
    %547 = vst.msk [vmem:[%s544 + $0x10] sm:$0xff] %vm468, %v542
    // Predicated region
    $region18: #{tpu_custom_call.1} parent=1 // pred_check
      _
    $region19: #{tpu_custom_call.1} parent=1 // pred_check_branch
      %549 = sbr.rel (0) target = $region21
    $region20: #{tpu_custom_call.1} parent=1 // pred_region
      %551 = vsyncadd [#allocation3], 0
      %s552 = sshll.u32 [#allocation2], 4
      %s553 = int_to_ptr.vmem [resolvable:$true] %s552
      %s554 = sshll.u32 %s4, 4
      %s555 = int_to_ptr.hbm [resolvable:$true] %s554
      %560 = dma.vmem_to_hbm [thread:$0]  %s553, 768, %s555, [#allocation3], 384, 384, 24
    $region21: #{tpu_custom_call.1} parent=1 // pred_fallthru
      _
    // Predicated region
    $region22: #{tpu_custom_call.1} parent=1 // pred_check
      _
    $region23: #{tpu_custom_call.1} parent=1 // pred_check_branch
      %562 = sbr.rel (0) target = $region25
    $region24: #{tpu_custom_call.1} parent=1 // pred_region
      %564 = dma.done [#allocation3], 768
    $region25: #{tpu_custom_call.1} parent=1 // pred_fallthru
      _
    %565 = vsyncpa [#allocation3], 1

</llo_original>
